<compile_context>
chip_gen: v7x
topology: tpu7x:2x2x1
jax: 0.10.0
libtpu: 0.0.40
codegen_flags: <defaults>
</compile_context>

<pallas_src>
import math

import jax
import jax.numpy as jnp
from jax.experimental import pallas as pl
from jax.experimental.pallas import tpu as pltpu

_LANE = 128


def _round_up(v, m):
    return ((v + m - 1) // m) * m


def _drop_path_kernel(mask_ref, x_ref, out_ref):
    """out = x * mask, mask is (TB, 1) f32 = keep * 1/(1-p), broadcast over lanes."""
    m = mask_ref[...]                                        # (TB, 1) float32
    out_ref[...] = (x_ref[...].astype(jnp.float32) * m).astype(out_ref.dtype)


def drop_path(x, drop_prob, *, training, key=None, seed=0):
    """Pallas DropPath. Matches the nn.Module forward semantics."""
    if drop_prob < 0 or drop_prob >= 1:
        raise ValueError("drop_prob should be in [0, 1)")
    if (not training) or drop_prob == 0.0:
        return x                                             # identity (eval / p == 0)

    orig_shape = x.shape
    B = int(orig_shape[0])
    N = int(math.prod(orig_shape[1:]))

    # --- per-sample keep mask, computed once in f32 (folds the 1/(1-p) rescale) ---
    if key is None:
        key = jax.random.PRNGKey(seed)
    u = jax.random.uniform(key, (B, 1), dtype=jnp.float32)
    keep = (u > drop_prob).astype(jnp.float32)               # torch: rand > p
    mask = keep * (1.0 / (1.0 - float(drop_prob)))           # (B, 1) f32

    # --- tile-size selection (lane-dense, multiple-of-(8,128) blocks) ---
    n_pad128 = _round_up(N, _LANE)
    TN = min(2048, n_pad128)                                 # 512–2048 lanes per block
    N_pad = _round_up(n_pad128, TN)

    if B <= 8:
        TB = B                                               # block == full batch dim: legal
        B_pad = B
    else:
        TB = min(_round_up(B, 8), 128)                       # multiple of 8, <= 128 rows
        B_pad = _round_up(B, TB)

    # --- pad to the block grid (cheap; pad region multiplies by zero-mask rows) ---
    x2 = x.reshape(B, N)
    if (B_pad != B) or (N_pad != N):
        x2 = jnp.pad(x2, ((0, B_pad - B), (0, N_pad - N)))
    mask_p = mask if B_pad == B else jnp.pad(mask, ((0, B_pad - B), (0, 0)))

    grid = (B_pad // TB, N_pad // TN)

    y = pl.pallas_call(
        _drop_path_kernel,
        out_shape=jax.ShapeDtypeStruct((B_pad, N_pad), x.dtype),
        grid=grid,
        in_specs=[
            pl.BlockSpec((TB, 1), lambda b, n: (b, 0)),      # tiny mask tile, reused along N
            pl.BlockSpec((TB, TN), lambda b, n: (b, n)),     # x tile
        ],
        out_specs=pl.BlockSpec((TB, TN), lambda b, n: (b, n)),
        compiler_params=pltpu.CompilerParams(
            dimension_semantics=("parallel", "parallel")),
    )(mask_p, x2)

    if (B_pad != B) or (N_pad != N):
        y = y[:B, :N]
    return y.reshape(orig_shape)


if __name__ == "__main__":
    key = jax.random.PRNGKey(0)
    B, C, H, W = 2, 4, 16, 16
    x = jax.random.normal(key, (B, C, H, W), dtype=jnp.float32)
    drop_prob = 0.25

    # Training path: per-sample stochastic depth.
    mask_key = jax.random.PRNGKey(1234)
    y = drop_path(x, drop_prob, training=True, key=mask_key)
    y = jax.block_until_ready(y)
    assert y.shape == x.shape

    # Each sample must be either fully dropped (all zeros) or kept & rescaled
    # by exactly 1/(1-p) -- the defining property of DropPath.
    scale = 1.0 / (1.0 - drop_prob)
    xr = x.reshape(B, -1)
    yr = y.reshape(B, -1)
    for b in range(B):
        kept = bool(jnp.allclose(yr[b], xr[b] * scale, rtol=1e-5, atol=1e-5))
        dropped = bool(jnp.all(yr[b] == 0.0))
        assert kept or dropped, f"sample {b}: neither kept-and-scaled nor dropped"

    # Eval path (and p == 0) is the identity, as in the module.
    y_eval = drop_path(x, drop_prob, training=False, key=mask_key)
    y_eval = jax.block_until_ready(y_eval)
    assert bool(jnp.all(y_eval == x))

    # Non-128-multiple feature count exercises the lane-padding path.
    x_odd = jax.random.normal(key, (3, 5, 7), dtype=jnp.float32)
    y_odd = jax.block_until_ready(
        drop_path(x_odd, drop_prob, training=True, key=mask_key))
    assert y_odd.shape == x_odd.shape

    print("KERNEL_OK")
</pallas_src>

<mosaic_0001>
module attributes {stable_mosaic.version = 11 : i64} {
  func.func @_drop_path_kernel(%arg0: i32, %arg1: i32, %arg2: memref<2x1xf32, #tpu.memory_space<vmem>>, %arg3: memref<2x1024xf32, #tpu.memory_space<vmem>>, %arg4: memref<2x1024xf32, #tpu.memory_space<vmem>>) attributes {dimension_semantics = [#tpu.dimension_semantics<parallel>, #tpu.dimension_semantics<parallel>], iteration_bounds = array<i64: 1, 1>, scalar_prefetch = 0 : i64, scratch_operands = 0 : i64, tpu.core_type = #tpu.core_type<tc>, window_params = [{transform_indices = @transform_0, window_bounds = array<i64: 2, 1>}, {transform_indices = @transform_1, window_bounds = array<i64: 2, 1024>}, {transform_indices = @transform_2, window_bounds = array<i64: 2, 1024>}]} {
    %c0 = arith.constant 0 : index
    %c0_0 = arith.constant 0 : index
    %0 = vector.load %arg2[%c0, %c0_0] : memref<2x1xf32, #tpu.memory_space<vmem>>, vector<2x1xf32>
    %c0_1 = arith.constant 0 : index
    %c0_2 = arith.constant 0 : index
    %1 = vector.load %arg3[%c0_1, %c0_2] : memref<2x1024xf32, #tpu.memory_space<vmem>>, vector<2x1024xf32>
    %2 = vector.broadcast %0 : vector<2x1xf32> to vector<2x1024xf32>
    %3 = arith.mulf %1, %2 : vector<2x1024xf32>
    %c0_3 = arith.constant 0 : index
    %c0_4 = arith.constant 0 : index
    %4 = vector.load %arg4[%c0_3, %c0_4] : memref<2x1024xf32, #tpu.memory_space<vmem>>, vector<2x1024xf32>
    tpu.vector_store %arg4[%c0_3, %c0_4], %3 {strides = array<i32>} : memref<2x1024xf32, #tpu.memory_space<vmem>>, vector<2x1024xf32>,
    return
  }
  func.func @transform_0(%arg0: i32, %arg1: i32) -> (i32, i32) {
    %c0_i32 = arith.constant 0 : i32
    %c0_i32_0 = arith.constant 0 : i32
    return %arg0, %c0_i32 : i32, i32
  }
  func.func @transform_1(%arg0: i32, %arg1: i32) -> (i32, i32) {
    %c0_i32 = arith.constant 0 : i32
    return %arg0, %arg1 : i32, i32
  }
  func.func @transform_2(%arg0: i32, %arg1: i32) -> (i32, i32) {
    %c0_i32 = arith.constant 0 : i32
    return %arg0, %arg1 : i32, i32
  }
}

</mosaic_0001>

<llo_original>
// kernel: tpu_custom_call.1
$region0: #{tpu_custom_call.1}
  #allocation0 [shape = 'u32[]', space=smem, size = 0x4, offset = 0x4, fixed_abs, tag = 'smem constant byte address 0x4 - core index']
  #allocation1 [shape = 'u32[144,128]{1,0:T(1,128)}', space=vmem, size = 0x12000, scoped, tag = 'internal scratch']
  %s0 = inlined_call_operand.vmem [shape: f32[2,1], index: 0, kind: input, shape index: {}]
  %s1 = inlined_call_operand.hbm [shape: f32[2,1024], index: 1, kind: input, shape index: {}]
  %s2 = inlined_call_operand.hbm [shape: f32[2,1024], index: 2, kind: output, shape index: {}]
  %s3 = sld [smem:[#allocation0]]
  $region22: #{tpu_custom_call.1} parent=0
    _
  %s5 = ssub.s32 1, %s3
  %s6 = scalar_select 0, %s5, %s3
  $region1: #{tpu_custom_call.1} parent=0
    #allocation2 [shape = 'u8[8192]{0}', space=vmem, size = 0x2000, scoped, tag = 'input window, operand 1, single buffered']
    #allocation3 [shape = 's32[1]{0}', space=sflag, size = 0x4, scoped, tag = 'scoped memory for tpu_custom_call.1']
    #allocation4 [shape = 's32[1]{0}', space=sflag, size = 0x4, scoped, tag = 'scoped memory for tpu_custom_call.1']
    #allocation5 [shape = 'u8[8192]{0}', space=vmem, size = 0x2000, scoped, tag = 'output window, operand 0, single buffered']
    %7 = vsyncpa [#allocation3], 0
    %8 = vsyncpa [#allocation4], 0
    // Predicated region
    $region2: #{tpu_custom_call.1} parent=1 // pred_check
      _
    $region3: #{tpu_custom_call.1} parent=1 // pred_check_branch
      %10 = sbr.rel (0) target = $region5
    $region4: #{tpu_custom_call.1} parent=1 // pred_region
      _
    $region5: #{tpu_custom_call.1} parent=1 // pred_fallthru
      _
    // Predicated region
    $region6: #{tpu_custom_call.1} parent=1 // pred_check
      _
    $region7: #{tpu_custom_call.1} parent=1 // pred_check_branch
      %12 = sbr.rel (0) target = $region9
    $region8: #{tpu_custom_call.1} parent=1 // pred_region
      %s14 = ssub.s32 256, 256
      %15 = vsyncadd [#allocation3], %s14
      %s17 = sshll.u32 [#allocation2], 4
      %s18 = int_to_ptr.vmem [resolvable:$true] %s17
      %20 = dma.hbm_to_vmem [thread:$0]  %s1, 256, %s18, [#allocation3]
    $region9: #{tpu_custom_call.1} parent=1 // pred_fallthru
      _
    // Predicated region
    $region10: #{tpu_custom_call.1} parent=1 // pred_check
      _
    $region11: #{tpu_custom_call.1} parent=1 // pred_check_branch
      %22 = sbr.rel (0) target = $region13
    $region12: #{tpu_custom_call.1} parent=1 // pred_region
      %23 = dma.done [#allocation3], 256
    $region13: #{tpu_custom_call.1} parent=1 // pred_fallthru
      _
    %v24 = vld [vmem:[%s0] sm:$0x3]
    %v25 = vld [vmem:[#allocation2] sm:$0xff]
    %v26 = vld [vmem:[#allocation2 + $0x8] sm:$0xff]
    %28 = vset.pattern.permute.xlu0 0
    %29 = vperm.xlu0 %28, %v24
    %v30 = vpop.permute.xlu0 %29
    %v32 = vunpack.c.l.s4 269488144
    %v33 = vunpack.c.0.s8 %v32
    %v34 = vlaneseq
    %v35 = vshrl.u32 %v34, 7
    %v36 = vsub.s32 %v33, %v35
    %v37 = vrot.slane %v30, %v36
    %v39 = vmul.f32 %v25, %v37
    %v40 = vmul.f32 %v26, %v37
    %41 = vst [vmem:[#allocation5] sm:$0xff] %v39
    %42 = vst [vmem:[#allocation5 + $0x8] sm:$0xff] %v40
    // Predicated region
    $region14: #{tpu_custom_call.1} parent=1 // pred_check
      _
    $region15: #{tpu_custom_call.1} parent=1 // pred_check_branch
      %44 = sbr.rel (0) target = $region17
    $region16: #{tpu_custom_call.1} parent=1 // pred_region
      %s46 = ssub.s32 256, 256
      %47 = vsyncadd [#allocation4], %s46
      %s49 = sshll.u32 [#allocation5], 4
      %s50 = int_to_ptr.vmem [resolvable:$true] %s49
      %52 = dma.vmem_to_hbm [thread:$0]  %s50, 256, %s2, [#allocation4]
    $region17: #{tpu_custom_call.1} parent=1 // pred_fallthru
      _
    // Predicated region
    $region18: #{tpu_custom_call.1} parent=1 // pred_check
      _
    $region19: #{tpu_custom_call.1} parent=1 // pred_check_branch
      %54 = sbr.rel (0) target = $region21
    $region20: #{tpu_custom_call.1} parent=1 // pred_region
      %55 = dma.done [#allocation4], 256
    $region21: #{tpu_custom_call.1} parent=1 // pred_fallthru
      _
    %56 = vsyncpa [#allocation3], 1
    %57 = vsyncpa [#allocation4], 1

</llo_original>
